<compile_context>
chip_gen: v7x
topology: tpu7x:2x2x1
jax: 0.10.0
libtpu: 0.0.40
codegen_flags: <defaults>
</compile_context>

<pallas_src>
import jax
import jax.numpy as jnp
from jax.experimental import pallas as pl
from jax.experimental.pallas import tpu as pltpu


def _make_fused_kernel(spatial, batch_tile, has_extra, compute_dtype):
    """Fused encoder (1x1 conv + ReLU + GAP) + extra-feature concat + linear decoder."""
    inv_s = 1.0 / float(spatial)

    def kernel(*refs):
        if has_extra:
            (x_ref, extra_ref, w_enc_ref, b_enc_ref,
             w_dz_ref, w_dx_ref, b_dec_ref, o_ref) = refs
        else:
            x_ref, w_enc_ref, b_enc_ref, w_dz_ref, b_dec_ref, o_ref = refs

        e_dim = w_enc_ref.shape[0]
        w_enc = w_enc_ref[...].astype(compute_dtype)            # (E, C)  bf16 for MXU
        b_enc = b_enc_ref[...]                                  # (E, 1)  f32
        # GAP as an MXU matmul: ones column with 1/S folded in (no XLU reduce).
        gap_col = jnp.full((spatial, 1), inv_s, dtype=jnp.float32)
        # one-hot lane selectors used to place each image's GAP column.
        lane_ids = jax.lax.broadcasted_iota(jnp.int32, (1, batch_tile), 1)

        z_mat = jnp.zeros((e_dim, batch_tile), jnp.float32)     # (E, Bt)
        for b in range(batch_tile):                             # static unroll, Bt <= 8
            xb = x_ref[b].astype(compute_dtype)                 # (C, S): S dense on lanes
            # 1x1 conv == matmul contracting C: (E,C)@(C,S) -> (E,S), f32 accumulate.
            h = jnp.dot(w_enc, xb, preferred_element_type=jnp.float32)
            h = jnp.maximum(h + b_enc, 0.0)                     # bias + ReLU (f32 VPU)
            # Global average pool on the MXU: (E,S)@(S,1) -> (E,1).
            zcol = jnp.dot(h, gap_col, preferred_element_type=jnp.float32)
            z_mat = z_mat + zcol * (lane_ids == b).astype(jnp.float32)

        z = z_mat.T                                             # (Bt, E), tiny transpose
        # Decoder, with extra-features folded in via the split weight (no concat).
        logits = jnp.dot(z, w_dz_ref[...], preferred_element_type=jnp.float32)
        if has_extra:
            logits = logits + jnp.dot(extra_ref[...], w_dx_ref[...],
                                      preferred_element_type=jnp.float32)
        logits = logits + b_dec_ref[...]
        o_ref[...] = logits.astype(o_ref.dtype)

    return kernel


def region_mil_forward(x_nchw, extra_features, params, *, compute_dtype=jnp.bfloat16):
    """Fused RegionMIL forward. Returns (logits, None) matching RegionMIL.forward."""
    B, C, H, W = x_nchw.shape
    S = H * W
    x = x_nchw.reshape(B, C, S)          # free reshape: NCHW is already (B, C, H*W)

    w_enc = params["w_enc"]              # (E, C)   PyTorch Conv2d 1x1 weight layout
    b_enc = params["b_enc"]              # (E, 1)
    w_dz = params["w_dec_z"]             # (E, NC)
    b_dec = params["b_dec"]              # (1, NC)
    E = w_enc.shape[0]
    NC = w_dz.shape[1]

    has_extra = extra_features is not None
    if has_extra:
        extra = extra_features.astype(jnp.float32)
        w_dx = params["w_dec_extra"]     # (NX, NC)
        NX = w_dx.shape[0]

    # Batch tiling: Bt images per grid step (amortizes per-step overhead).
    Bt = B if B <= 8 else 8
    pad = (-B) % Bt
    if pad:
        x = jnp.pad(x, ((0, pad), (0, 0), (0, 0)))
        if has_extra:
            extra = jnp.pad(extra, ((0, pad), (0, 0)))
    Bp = B + pad

    kernel = _make_fused_kernel(S, Bt, has_extra, compute_dtype)

    in_specs = [pl.BlockSpec((Bt, C, S), lambda i: (i, 0, 0))]
    args = [x]
    if has_extra:
        in_specs.append(pl.BlockSpec((Bt, NX), lambda i: (i, 0)))
        args.append(extra)
    in_specs += [
        pl.BlockSpec((E, C), lambda i: (0, 0)),
        pl.BlockSpec((E, 1), lambda i: (0, 0)),
        pl.BlockSpec((E, NC), lambda i: (0, 0)),
    ]
    args += [w_enc, b_enc, w_dz]
    if has_extra:
        in_specs.append(pl.BlockSpec((NX, NC), lambda i: (0, 0)))
        args.append(w_dx)
    in_specs.append(pl.BlockSpec((1, NC), lambda i: (0, 0)))
    args.append(b_dec)

    flops = Bp * (2 * C * S * E + 2 * E * S) + 2 * Bp * E * NC + Bp * NC
    if has_extra:
        flops += 2 * Bp * NX * NC
    bytes_accessed = sum(int(a.size) * a.dtype.itemsize for a in args) + Bp * NC * 4

    logits = pl.pallas_call(
        kernel,
        out_shape=jax.ShapeDtypeStruct((Bp, NC), jnp.float32),
        grid_spec=pltpu.PrefetchScalarGridSpec(
            num_scalar_prefetch=0,
            grid=(Bp // Bt,),
            in_specs=in_specs,
            out_specs=pl.BlockSpec((Bt, NC), lambda i: (i, 0)),
        ),
        compiler_params=pltpu.CompilerParams(dimension_semantics=("parallel",)),
        cost_estimate=pl.CostEstimate(flops=flops, transcendentals=0,
                                      bytes_accessed=int(bytes_accessed)),
    )(*args)

    if pad:
        logits = logits[:B]
    # torch: `if z.dim() == 1: z = z.unsqueeze(0)` -- z is always 2D here.
    return logits, None


def init_params(key, in_channels, encoder_dim, n_extra, num_classes):
    k1, k2, k3, k4, k5 = jax.random.split(key, 5)
    p = {
        # 1x1 conv weight in PyTorch (out, in) layout; bias stored as a column.
        "w_enc": jax.random.normal(k1, (encoder_dim, in_channels), jnp.float32) * 0.1,
        "b_enc": jax.random.normal(k2, (encoder_dim, 1), jnp.float32) * 0.01,
        # decoder Linear split: logits = z @ w_dec_z + extra @ w_dec_extra + b_dec
        "w_dec_z": jax.random.normal(k3, (encoder_dim, num_classes), jnp.float32) * 0.1,
        "b_dec": jax.random.normal(k5, (1, num_classes), jnp.float32) * 0.01,
    }
    if n_extra:
        p["w_dec_extra"] = jax.random.normal(k4, (n_extra, num_classes), jnp.float32) * 0.1
    return p


if __name__ == "__main__":
    B, C, H, W = 2, 4, 16, 16
    E = 32            # encoder out_dim
    N_EXTRA = 2       # len(self.extra_features)
    NUM_CLASSES = 5

    key = jax.random.PRNGKey(0)
    kx, ke, kp = jax.random.split(key, 3)
    x = jax.random.normal(kx, (B, C, H, W), jnp.float32)
    extra = jax.random.normal(ke, (B, N_EXTRA), jnp.float32)
    params = init_params(kp, C, E, N_EXTRA, NUM_CLASSES)

    logits, aux = region_mil_forward(x, extra, params, compute_dtype=jnp.bfloat16)
    logits = jax.block_until_ready(logits)
    assert logits.shape == (B, NUM_CLASSES)
    assert aux is None

    # Reference in plain JAX (same bf16-operand / f32-accumulate math as the kernel).
    xr = x.reshape(B, C, H * W).astype(jnp.bfloat16)
    wr = params["w_enc"].astype(jnp.bfloat16)
    h = jnp.einsum("ec,bcs->bes", wr, xr, preferred_element_type=jnp.float32)
    h = jnp.maximum(h + params["b_enc"][None], 0.0)
    z_ref = jnp.mean(h, axis=2)                                       # (B, E)
    ref = z_ref @ params["w_dec_z"] + extra @ params["w_dec_extra"] + params["b_dec"]
    assert jnp.allclose(logits, ref, atol=2e-3, rtol=2e-3), \
        float(jnp.max(jnp.abs(logits - ref)))

    print("KERNEL_OK")
</pallas_src>

<mosaic_0001>
module attributes {stable_mosaic.version = 11 : i64} {
  func.func @kernel(%arg0: i32, %arg1: memref<2x4x256xf32, #tpu.memory_space<vmem>>, %arg2: memref<2x2xf32, #tpu.memory_space<vmem>>, %arg3: memref<32x4xf32, #tpu.memory_space<vmem>>, %arg4: memref<32x1xf32, #tpu.memory_space<vmem>>, %arg5: memref<32x5xf32, #tpu.memory_space<vmem>>, %arg6: memref<2x5xf32, #tpu.memory_space<vmem>>, %arg7: memref<1x5xf32, #tpu.memory_space<vmem>>, %arg8: memref<2x5xf32, #tpu.memory_space<vmem>>) attributes {dimension_semantics = [#tpu.dimension_semantics<parallel>], iteration_bounds = array<i64: 1>, scalar_prefetch = 0 : i64, scratch_operands = 0 : i64, tpu.core_type = #tpu.core_type<tc>, window_params = [{transform_indices = @transform_0, window_bounds = array<i64: 2, 4, 256>}, {transform_indices = @transform_1, window_bounds = array<i64: 2, 2>}, {pipeline_mode = #tpu.pipeline_mode<synchronous>, transform_indices = @transform_2, window_bounds = array<i64: 32, 4>}, {pipeline_mode = #tpu.pipeline_mode<synchronous>, transform_indices = @transform_3, window_bounds = array<i64: 32, 1>}, {pipeline_mode = #tpu.pipeline_mode<synchronous>, transform_indices = @transform_4, window_bounds = array<i64: 32, 5>}, {pipeline_mode = #tpu.pipeline_mode<synchronous>, transform_indices = @transform_5, window_bounds = array<i64: 2, 5>}, {pipeline_mode = #tpu.pipeline_mode<synchronous>, transform_indices = @transform_6, window_bounds = array<i64: 1, 5>}, {transform_indices = @transform_7, window_bounds = array<i64: 2, 5>}]} {
    %c0 = arith.constant 0 : index
    %c0_0 = arith.constant 0 : index
    %0 = vector.load %arg3[%c0, %c0_0] : memref<32x4xf32, #tpu.memory_space<vmem>>, vector<32x4xf32>
    %1 = arith.truncf %0 : vector<32x4xf32> to vector<32x4xbf16>
    %c0_1 = arith.constant 0 : index
    %c0_2 = arith.constant 0 : index
    %2 = vector.load %arg4[%c0_1, %c0_2] : memref<32x1xf32, #tpu.memory_space<vmem>>, vector<32x1xf32>
    %cst = arith.constant 3.906250e-03 : f32
    %3 = vector.broadcast %cst : f32 to vector<256x1xf32>
    %4 = tpu.iota {dimensions = array<i32: 1>} : vector<1x2xi32>
    %cst_3 = arith.constant 0.000000e+00 : f32
    %5 = vector.broadcast %cst_3 : f32 to vector<32x2xf32>
    %c0_4 = arith.constant 0 : index
    %c0_5 = arith.constant 0 : index
    %c0_6 = arith.constant 0 : index
    %6 = vector.load %arg1[%c0_4, %c0_5, %c0_6] : memref<2x4x256xf32, #tpu.memory_space<vmem>>, vector<1x4x256xf32>
    %7 = vector.shape_cast %6 : vector<1x4x256xf32> to vector<4x256xf32>
    %8 = arith.truncf %7 : vector<4x256xf32> to vector<4x256xbf16>
    %cst_7 = arith.constant dense<0.000000e+00> : vector<32x256xf32>
    %9 = tpu.matmul %1, %8, %cst_7 {dimension_numbers = #tpu.dot_dimension_numbers<[1], [0], [0], [1], [0, 0, 1, 1], [], []>} : vector<32x4xbf16>, vector<4x256xbf16>, vector<32x256xf32> -> vector<32x256xf32>
    %10 = vector.broadcast %2 : vector<32x1xf32> to vector<32x256xf32>
    %11 = arith.addf %9, %10 : vector<32x256xf32>
    %cst_8 = arith.constant 0.000000e+00 : f32
    %12 = vector.broadcast %cst_8 : f32 to vector<32x256xf32>
    %13 = arith.maximumf %11, %12 : vector<32x256xf32>
    %cst_9 = arith.constant dense<0.000000e+00> : vector<32x1xf32>
    %14 = tpu.matmul %13, %3, %cst_9 {dimension_numbers = #tpu.dot_dimension_numbers<[1], [0], [0], [1], [0, 0, 1, 1], [], []>} : vector<32x256xf32>, vector<256x1xf32>, vector<32x1xf32> -> vector<32x1xf32>
    %c0_i32 = arith.constant 0 : i32
    %15 = vector.broadcast %c0_i32 : i32 to vector<1x2xi32>
    %16 = arith.cmpi eq, %4, %15 : vector<1x2xi32>
    %17 = arith.extui %16 : vector<1x2xi1> to vector<1x2xi32>
    %18 = arith.sitofp %17 : vector<1x2xi32> to vector<1x2xf32>
    %19 = vector.broadcast %14 : vector<32x1xf32> to vector<32x2xf32>
    %20 = vector.broadcast %18 : vector<1x2xf32> to vector<32x2xf32>
    %21 = arith.mulf %19, %20 : vector<32x2xf32>
    %22 = arith.addf %5, %21 : vector<32x2xf32>
    %c1 = arith.constant 1 : index
    %c0_10 = arith.constant 0 : index
    %c0_11 = arith.constant 0 : index
    %23 = vector.load %arg1[%c1, %c0_10, %c0_11] : memref<2x4x256xf32, #tpu.memory_space<vmem>>, vector<1x4x256xf32>
    %24 = vector.shape_cast %23 : vector<1x4x256xf32> to vector<4x256xf32>
    %25 = arith.truncf %24 : vector<4x256xf32> to vector<4x256xbf16>
    %cst_12 = arith.constant dense<0.000000e+00> : vector<32x256xf32>
    %26 = tpu.matmul %1, %25, %cst_12 {dimension_numbers = #tpu.dot_dimension_numbers<[1], [0], [0], [1], [0, 0, 1, 1], [], []>} : vector<32x4xbf16>, vector<4x256xbf16>, vector<32x256xf32> -> vector<32x256xf32>
    %27 = vector.broadcast %2 : vector<32x1xf32> to vector<32x256xf32>
    %28 = arith.addf %26, %27 : vector<32x256xf32>
    %cst_13 = arith.constant 0.000000e+00 : f32
    %29 = vector.broadcast %cst_13 : f32 to vector<32x256xf32>
    %30 = arith.maximumf %28, %29 : vector<32x256xf32>
    %cst_14 = arith.constant dense<0.000000e+00> : vector<32x1xf32>
    %31 = tpu.matmul %30, %3, %cst_14 {dimension_numbers = #tpu.dot_dimension_numbers<[1], [0], [0], [1], [0, 0, 1, 1], [], []>} : vector<32x256xf32>, vector<256x1xf32>, vector<32x1xf32> -> vector<32x1xf32>
    %c1_i32 = arith.constant 1 : i32
    %32 = vector.broadcast %c1_i32 : i32 to vector<1x2xi32>
    %33 = arith.cmpi eq, %4, %32 : vector<1x2xi32>
    %34 = arith.extui %33 : vector<1x2xi1> to vector<1x2xi32>
    %35 = arith.sitofp %34 : vector<1x2xi32> to vector<1x2xf32>
    %36 = vector.broadcast %31 : vector<32x1xf32> to vector<32x2xf32>
    %37 = vector.broadcast %35 : vector<1x2xf32> to vector<32x2xf32>
    %38 = arith.mulf %36, %37 : vector<32x2xf32>
    %39 = arith.addf %22, %38 : vector<32x2xf32>
    %40 = tpu.transpose %39, [1, 0] : vector<32x2xf32> -> vector<2x32xf32>
    %c0_15 = arith.constant 0 : index
    %c0_16 = arith.constant 0 : index
    %41 = vector.load %arg5[%c0_15, %c0_16] : memref<32x5xf32, #tpu.memory_space<vmem>>, vector<32x5xf32>
    %cst_17 = arith.constant dense<0.000000e+00> : vector<2x5xf32>
    %42 = tpu.matmul %40, %41, %cst_17 {dimension_numbers = #tpu.dot_dimension_numbers<[1], [0], [0], [1], [0, 0, 1, 1], [], []>} : vector<2x32xf32>, vector<32x5xf32>, vector<2x5xf32> -> vector<2x5xf32>
    %c0_18 = arith.constant 0 : index
    %c0_19 = arith.constant 0 : index
    %43 = vector.load %arg2[%c0_18, %c0_19] : memref<2x2xf32, #tpu.memory_space<vmem>>, vector<2x2xf32>
    %c0_20 = arith.constant 0 : index
    %c0_21 = arith.constant 0 : index
    %44 = vector.load %arg6[%c0_20, %c0_21] : memref<2x5xf32, #tpu.memory_space<vmem>>, vector<2x5xf32>
    %cst_22 = arith.constant dense<0.000000e+00> : vector<2x5xf32>
    %45 = tpu.matmul %43, %44, %cst_22 {dimension_numbers = #tpu.dot_dimension_numbers<[1], [0], [0], [1], [0, 0, 1, 1], [], []>} : vector<2x2xf32>, vector<2x5xf32>, vector<2x5xf32> -> vector<2x5xf32>
    %46 = arith.addf %42, %45 : vector<2x5xf32>
    %c0_23 = arith.constant 0 : index
    %c0_24 = arith.constant 0 : index
    %47 = vector.load %arg7[%c0_23, %c0_24] : memref<1x5xf32, #tpu.memory_space<vmem>>, vector<1x5xf32>
    %48 = vector.broadcast %47 : vector<1x5xf32> to vector<2x5xf32>
    %49 = arith.addf %46, %48 : vector<2x5xf32>
    %c0_25 = arith.constant 0 : index
    %c0_26 = arith.constant 0 : index
    %50 = vector.load %arg8[%c0_25, %c0_26] : memref<2x5xf32, #tpu.memory_space<vmem>>, vector<2x5xf32>
    tpu.vector_store %arg8[%c0_25, %c0_26], %49 {strides = array<i32>} : memref<2x5xf32, #tpu.memory_space<vmem>>, vector<2x5xf32>,
    return
  }
  func.func @transform_0(%arg0: i32) -> (i32, i32, i32) {
    %c0_i32 = arith.constant 0 : i32
    %c0_i32_0 = arith.constant 0 : i32
    %c0_i32_1 = arith.constant 0 : i32
    return %arg0, %c0_i32, %c0_i32_0 : i32, i32, i32
  }
  func.func @transform_1(%arg0: i32) -> (i32, i32) {
    %c0_i32 = arith.constant 0 : i32
    %c0_i32_0 = arith.constant 0 : i32
    return %arg0, %c0_i32 : i32, i32
  }
  func.func @transform_2(%arg0: i32) -> (i32, i32) {
    %c0_i32 = arith.constant 0 : i32
    %c0_i32_0 = arith.constant 0 : i32
    %c0_i32_1 = arith.constant 0 : i32
    return %c0_i32, %c0_i32_0 : i32, i32
  }
  func.func @transform_3(%arg0: i32) -> (i32, i32) {
    %c0_i32 = arith.constant 0 : i32
    %c0_i32_0 = arith.constant 0 : i32
    %c0_i32_1 = arith.constant 0 : i32
    return %c0_i32, %c0_i32_0 : i32, i32
  }
  func.func @transform_4(%arg0: i32) -> (i32, i32) {
    %c0_i32 = arith.constant 0 : i32
    %c0_i32_0 = arith.constant 0 : i32
    %c0_i32_1 = arith.constant 0 : i32
    return %c0_i32, %c0_i32_0 : i32, i32
  }
  func.func @transform_5(%arg0: i32) -> (i32, i32) {
    %c0_i32 = arith.constant 0 : i32
    %c0_i32_0 = arith.constant 0 : i32
    %c0_i32_1 = arith.constant 0 : i32
    return %c0_i32, %c0_i32_0 : i32, i32
  }
  func.func @transform_6(%arg0: i32) -> (i32, i32) {
    %c0_i32 = arith.constant 0 : i32
    %c0_i32_0 = arith.constant 0 : i32
    %c0_i32_1 = arith.constant 0 : i32
    return %c0_i32, %c0_i32_0 : i32, i32
  }
  func.func @transform_7(%arg0: i32) -> (i32, i32) {
    %c0_i32 = arith.constant 0 : i32
    %c0_i32_0 = arith.constant 0 : i32
    return %arg0, %c0_i32 : i32, i32
  }
}

</mosaic_0001>

<llo_original>
// kernel: tpu_custom_call.1
$region0: #{tpu_custom_call.1}
  #allocation0 [shape = 'u32[]', space=smem, size = 0x4, offset = 0x4, fixed_abs, tag = 'smem constant byte address 0x4 - core index']
  #allocation1 [shape = 'u32[144,128]{1,0:T(1,128)}', space=vmem, size = 0x12000, scoped, tag = 'internal scratch']
  %s0 = inlined_call_operand.vmem [shape: f32[2,4,256], index: 0, kind: input, shape index: {}]
  %s1 = inlined_call_operand.vmem [shape: f32[2,2], index: 1, kind: input, shape index: {}]
  %s2 = inlined_call_operand.vmem [shape: f32[32,4], index: 2, kind: input, shape index: {}]
  %s3 = inlined_call_operand.vmem [shape: f32[32,1], index: 3, kind: input, shape index: {}]
  %s4 = inlined_call_operand.vmem [shape: f32[32,5], index: 4, kind: input, shape index: {}]
  %s5 = inlined_call_operand.vmem [shape: f32[2,5], index: 5, kind: input, shape index: {}]
  %s6 = inlined_call_operand.vmem [shape: f32[1,5], index: 6, kind: input, shape index: {}]
  %s7 = inlined_call_operand.hbm [shape: f32[2,5], index: 7, kind: output, shape index: {}]
  %s8 = sld [smem:[#allocation0]]
  $region38: #{tpu_custom_call.1} parent=0
    _
  %s10 = ssub.s32 1, %s8
  %s11 = scalar_select 0, %s10, %s8
  $region1: #{tpu_custom_call.1} parent=0
    #allocation2 [shape = 'u8[1024]{0}', space=vmem, size = 0x400, scoped, tag = 'output window, operand 0, single buffered']
    #allocation3 [shape = 's32[1]{0}', space=sflag, size = 0x4, scoped, tag = 'scoped memory for tpu_custom_call.1']
    %12 = vsyncpa [#allocation3], 0
    // Predicated region
    $region2: #{tpu_custom_call.1} parent=1 // pred_check
      _
    $region3: #{tpu_custom_call.1} parent=1 // pred_check_branch
      %14 = sbr.rel (0) target = $region5
    $region4: #{tpu_custom_call.1} parent=1 // pred_region
      _
    $region5: #{tpu_custom_call.1} parent=1 // pred_fallthru
      _
    // Predicated region
    $region6: #{tpu_custom_call.1} parent=1 // pred_check
      _
    $region7: #{tpu_custom_call.1} parent=1 // pred_check_branch
      %16 = sbr.rel (0) target = $region9
    $region8: #{tpu_custom_call.1} parent=1 // pred_region
      _
    $region9: #{tpu_custom_call.1} parent=1 // pred_fallthru
      _
    // Predicated region
    $region10: #{tpu_custom_call.1} parent=1 // pred_check
      _
    $region11: #{tpu_custom_call.1} parent=1 // pred_check_branch
      %18 = sbr.rel (0) target = $region13
    $region12: #{tpu_custom_call.1} parent=1 // pred_region
      _
    $region13: #{tpu_custom_call.1} parent=1 // pred_fallthru
      _
    // Predicated region
    $region14: #{tpu_custom_call.1} parent=1 // pred_check
      _
    $region15: #{tpu_custom_call.1} parent=1 // pred_check_branch
      %20 = sbr.rel (0) target = $region17
    $region16: #{tpu_custom_call.1} parent=1 // pred_region
      _
    $region17: #{tpu_custom_call.1} parent=1 // pred_fallthru
      _
    // Predicated region
    $region18: #{tpu_custom_call.1} parent=1 // pred_check
      _
    $region19: #{tpu_custom_call.1} parent=1 // pred_check_branch
      %22 = sbr.rel (0) target = $region21
    $region20: #{tpu_custom_call.1} parent=1 // pred_region
      _
    $region21: #{tpu_custom_call.1} parent=1 // pred_fallthru
      _
    // Predicated region
    $region22: #{tpu_custom_call.1} parent=1 // pred_check
      _
    $region23: #{tpu_custom_call.1} parent=1 // pred_check_branch
      %24 = sbr.rel (0) target = $region25
    $region24: #{tpu_custom_call.1} parent=1 // pred_region
      _
    $region25: #{tpu_custom_call.1} parent=1 // pred_fallthru
      _
    // Predicated region
    $region26: #{tpu_custom_call.1} parent=1 // pred_check
      _
    $region27: #{tpu_custom_call.1} parent=1 // pred_check_branch
      %26 = sbr.rel (0) target = $region29
    $region28: #{tpu_custom_call.1} parent=1 // pred_region
      _
    $region29: #{tpu_custom_call.1} parent=1 // pred_fallthru
      _
    %v28 = vld [vmem:[%s2] sm:$0xff]
    %v29 = vld [vmem:[%s2 + $0x8] sm:$0xff]
    %v30 = vld [vmem:[%s2 + $0x10] sm:$0xff]
    %v31 = vld [vmem:[%s2 + $0x18] sm:$0xff]
    %v32 = vpack.c.bf16 %v29, %v28
    %v33 = vpack.c.bf16 %v31, %v30
    %v34 = vld [vmem:[%s3] sm:$0xff]
    %v35 = vld [vmem:[%s3 + $0x8] sm:$0xff]
    %v36 = vld [vmem:[%s3 + $0x10] sm:$0xff]
    %v37 = vld [vmem:[%s3 + $0x18] sm:$0xff]
    %v38 = vlaneseq
    %v39 = vand.u32 %v38, 127
    %v40 = vld [vmem:[%s0] sm:$0xff]
    %v42 = vcombine.high %v40, %v40
    %v44 = vpack.c.bf16 %v40, %v40
    %v45 = vpack.c.bf16 %v42, %v42
    %47 = vset.pattern.permute.xlu0 0
    %48 = vperm.xlu0 %47, %v34
    %v49 = vpop.permute.xlu0 %48
    %52 = vset.pattern.permute.xlu0 0
    %53 = vperm.xlu0 %52, %v35
    %v54 = vpop.permute.xlu0 %53
    %57 = vset.pattern.permute.xlu0 0
    %58 = vperm.xlu0 %57, %v36
    %v59 = vpop.permute.xlu0 %58
    %62 = vset.pattern.permute.xlu0 0
    %63 = vperm.xlu0 %62, %v37
    %v64 = vpop.permute.xlu0 %63
    %vm66 = vcmask 31744
    %v68 = vsel %vm66, %v32, 0
    %v71 = vsel %vm66, %v33, 0
    %vm73 = vcmask 1041408
    %v75 = vsel %vm73, %v44, 0
    %v78 = vsel %vm73, %v45, 0
    %80 = vmatprep.subr.bf16.mxu0 %v78
    %81 = vmatpush1.bf16.msra.mxu0 %v75
    %82 = vmatprep.subr.bf16.mxu0 0
    %83 = vmatpush1.bf16.msra.mxu0 0
    %84 = vmatprep.subr.bf16.mxu0 0
    %85 = vmatpush1.bf16.msra.mxu0 0
    %86 = vmatprep.subr.bf16.mxu0 0
    %87 = vmatpush1.bf16.msra.mxu0 0
    %88 = vmatprep.subr.bf16.mxu0 0
    %89 = vmatpush1.bf16.msra.mxu0 0
    %90 = vmatprep.subr.bf16.mxu0 0
    %91 = vmatpush1.bf16.msra.mxu0 0
    %92 = vmatprep.subr.bf16.mxu0 0
    %93 = vmatpush1.bf16.msra.mxu0 0
    %94 = vmatprep.subr.bf16.mxu0 0
    %95 = vmatpush1.bf16.msra.mxu0 0
    %96 = vmatprep.subr.bf16.mxu0 0
    %97 = vmatpush1.bf16.msra.mxu0 0
    %98 = vmatprep.subr.bf16.mxu0 0
    %99 = vmatpush1.bf16.msra.mxu0 0
    %100 = vmatprep.subr.bf16.mxu0 0
    %101 = vmatpush1.bf16.msra.mxu0 0
    %102 = vmatprep.subr.bf16.mxu0 0
    %103 = vmatpush1.bf16.msra.mxu0 0
    %104 = vmatprep.subr.bf16.mxu0 0
    %105 = vmatpush1.bf16.msra.mxu0 0
    %106 = vmatprep.subr.bf16.mxu0 0
    %107 = vmatpush1.bf16.msra.mxu0 0
    %108 = vmatprep.subr.bf16.mxu0 0
    %109 = vmatpush1.bf16.msra.mxu0 0
    %110 = vmatprep.subr.bf16.mxu0 0
    %111 = vmatpush1.bf16.msra.mxu0 0
    %112 = vmatprep.mubr.bf16.mxu0 0
    %113 = vmatmul.mubr.bf16.gmra.mrb[0].mxu0 %v68
    %v114 = vpop.f32.mrb[0].mxu0
    %v115 = vadd.f32 %v49, %v114
    %v116 = vpop.f32.mrb[0].mxu0
    %v117 = vadd.f32 %v49, %v116
    %v118 = vpop.f32.mrb[0].mxu0
    %v119 = vadd.f32 %v54, %v118
    %v120 = vpop.f32.mrb[0].mxu0
    %v121 = vadd.f32 %v54, %v120
    %122 = vmatprep.mubr.bf16.mxu0 0
    %123 = vmatmul.mubr.bf16.gmra.mrb[0].mxu0 %v71
    %v124 = vpop.f32.mrb[0].mxu0
    %v125 = vadd.f32 %v59, %v124
    %v126 = vpop.f32.mrb[0].mxu0
    %v127 = vadd.f32 %v59, %v126
    %v128 = vpop.f32.mrb[0].mxu0
    %v129 = vadd.f32 %v64, %v128
    %v130 = vpop.f32.mrb[0].mxu0
    %v131 = vadd.f32 %v64, %v130
    %132 = vdwg.mxu0
    %v133 = vmax.f32 %v115, 0.0
    %v134 = vmax.f32 %v117, 0.0
    %v135 = vmax.f32 %v119, 0.0
    %v136 = vmax.f32 %v121, 0.0
    %v137 = vmax.f32 %v125, 0.0
    %v138 = vmax.f32 %v127, 0.0
    %v139 = vmax.f32 %v129, 0.0
    %v140 = vmax.f32 %v131, 0.0
    %141 = vmatprep.subr.mxu0 0.0
    %142 = vmatpush1.msra.mxu0 0.00390625
    %143 = vmatprep.subr.mxu0 0.0
    %144 = vmatpush1.msra.mxu0 0.00390625
    %145 = vmatprep.subr.mxu0 0.0
    %146 = vmatpush1.msra.mxu0 0.00390625
    %147 = vmatprep.subr.mxu0 0.0
    %148 = vmatpush1.msra.mxu0 0.00390625
    %149 = vmatprep.subr.mxu0 0.0
    %150 = vmatpush1.msra.mxu0 0.00390625
    %151 = vmatprep.subr.mxu0 0.0
    %152 = vmatpush1.msra.mxu0 0.00390625
    %153 = vmatprep.subr.mxu0 0.0
    %154 = vmatpush1.msra.mxu0 0.00390625
    %155 = vmatprep.subr.mxu0 0.0
    %156 = vmatpush1.msra.mxu0 0.00390625
    %157 = vmatprep.subr.mxu0 0.0
    %158 = vmatpush1.msra.mxu0 0.00390625
    %159 = vmatprep.subr.mxu0 0.0
    %160 = vmatpush1.msra.mxu0 0.00390625
    %161 = vmatprep.subr.mxu0 0.0
    %162 = vmatpush1.msra.mxu0 0.00390625
    %163 = vmatprep.subr.mxu0 0.0
    %164 = vmatpush1.msra.mxu0 0.00390625
    %165 = vmatprep.subr.mxu0 0.0
    %166 = vmatpush1.msra.mxu0 0.00390625
    %167 = vmatprep.subr.mxu0 0.0
    %168 = vmatpush1.msra.mxu0 0.00390625
    %169 = vmatprep.subr.mxu0 0.0
    %170 = vmatpush1.msra.mxu0 0.00390625
    %171 = vmatprep.subr.mxu0 0.0
    %172 = vmatpush1.msra.mxu0 0.00390625
    %173 = vmatprep.subr.mxu0 0.0
    %174 = vmatpush1.msra.mxu0 0.00390625
    %175 = vmatprep.subr.mxu0 0.0
    %176 = vmatpush1.msra.mxu0 0.00390625
    %177 = vmatprep.subr.mxu0 0.0
    %178 = vmatpush1.msra.mxu0 0.00390625
    %179 = vmatprep.subr.mxu0 0.0
    %180 = vmatpush1.msra.mxu0 0.00390625
    %181 = vmatprep.subr.mxu0 0.0
    %182 = vmatpush1.msra.mxu0 0.00390625
    %183 = vmatprep.subr.mxu0 0.0
    %184 = vmatpush1.msra.mxu0 0.00390625
    %185 = vmatprep.subr.mxu0 0.0
    %186 = vmatpush1.msra.mxu0 0.00390625
    %187 = vmatprep.subr.mxu0 0.0
    %188 = vmatpush1.msra.mxu0 0.00390625
    %189 = vmatprep.subr.mxu0 0.0
    %190 = vmatpush1.msra.mxu0 0.00390625
    %191 = vmatprep.subr.mxu0 0.0
    %192 = vmatpush1.msra.mxu0 0.00390625
    %193 = vmatprep.subr.mxu0 0.0
    %194 = vmatpush1.msra.mxu0 0.00390625
    %195 = vmatprep.subr.mxu0 0.0
    %196 = vmatpush1.msra.mxu0 0.00390625
    %197 = vmatprep.subr.mxu0 0.0
    %198 = vmatpush1.msra.mxu0 0.00390625
    %199 = vmatprep.subr.mxu0 0.0
    %200 = vmatpush1.msra.mxu0 0.00390625
    %201 = vmatprep.subr.mxu0 0.0
    %202 = vmatpush1.msra.mxu0 0.00390625
    %203 = vmatprep.subr.mxu0 0.0
    %204 = vmatpush1.msra.mxu0 0.00390625
    %205 = vmatprep.mubr.f32.mxu0 %v134
    %206 = vmatmul.mubr.f32.gmra.mrb[0].mxu0 %v133
    %v207 = vpop.f32.mrb[0].mxu0
    %v208 = vadd.f32 0.0, %v207
    %v209 = vpop.f32.mrb[0].mxu0
    %210 = vmatprep.mubr.f32.mxu0 %v136
    %211 = vmatmul.mubr.f32.gmra.mrb[0].mxu0 %v135
    %v212 = vpop.f32.mrb[0].mxu0
    %v213 = vadd.f32 0.0, %v212
    %v214 = vpop.f32.mrb[0].mxu0
    %215 = vmatprep.mubr.f32.mxu0 %v138
    %216 = vmatmul.mubr.f32.gmra.mrb[0].mxu0 %v137
    %v217 = vpop.f32.mrb[0].mxu0
    %v218 = vadd.f32 0.0, %v217
    %v219 = vpop.f32.mrb[0].mxu0
    %220 = vmatprep.mubr.f32.mxu0 %v140
    %221 = vmatmul.mubr.f32.gmra.mrb[0].mxu0 %v139
    %v222 = vpop.f32.mrb[0].mxu0
    %v223 = vadd.f32 0.0, %v222
    %v224 = vpop.f32.mrb[0].mxu0
    %225 = vdwg.mxu0
    %vm226 = vcmp.eq.s32.totalorder %v39, 0
    %v227 = vsel %vm226, 1, 0
    %v228 = vcvt.s32.f32 %v227
    %230 = vset.pattern.permute.xlu0 0
    %231 = vperm.xlu0 %230, %v208
    %v232 = vpop.permute.xlu0 %231
    %235 = vset.pattern.permute.xlu0 0
    %236 = vperm.xlu0 %235, %v213
    %v237 = vpop.permute.xlu0 %236
    %240 = vset.pattern.permute.xlu0 0
    %241 = vperm.xlu0 %240, %v218
    %v242 = vpop.permute.xlu0 %241
    %245 = vset.pattern.permute.xlu0 0
    %246 = vperm.xlu0 %245, %v223
    %v247 = vpop.permute.xlu0 %246
    %v249 = vmul.f32 %v232, %v228
    %v250 = vmul.f32 %v237, %v228
    %v251 = vmul.f32 %v242, %v228
    %v252 = vmul.f32 %v247, %v228
    %v253 = vadd.f32 %v249, 0.0
    %v254 = vadd.f32 %v250, 0.0
    %v255 = vadd.f32 %v251, 0.0
    %v256 = vadd.f32 %v252, 0.0
    %s257 = scalar_lea.vmem %s0, 8
    %v258 = vld [vmem:[%s257] sm:$0xff]
    %v260 = vcombine.high %v258, %v258
    %v262 = vpack.c.bf16 %v258, %v258
    %v263 = vpack.c.bf16 %v260, %v260
    %v265 = vsel %vm73, %v262, 0
    %v268 = vsel %vm73, %v263, 0
    %270 = vmatprep.subr.bf16.mxu0 %v268
    %271 = vmatpush1.bf16.msra.mxu0 %v265
    %272 = vmatprep.subr.bf16.mxu0 0
    %273 = vmatpush1.bf16.msra.mxu0 0
    %274 = vmatprep.subr.bf16.mxu0 0
    %275 = vmatpush1.bf16.msra.mxu0 0
    %276 = vmatprep.subr.bf16.mxu0 0
    %277 = vmatpush1.bf16.msra.mxu0 0
    %278 = vmatprep.subr.bf16.mxu0 0
    %279 = vmatpush1.bf16.msra.mxu0 0
    %280 = vmatprep.subr.bf16.mxu0 0
    %281 = vmatpush1.bf16.msra.mxu0 0
    %282 = vmatprep.subr.bf16.mxu0 0
    %283 = vmatpush1.bf16.msra.mxu0 0
    %284 = vmatprep.subr.bf16.mxu0 0
    %285 = vmatpush1.bf16.msra.mxu0 0
    %286 = vmatprep.subr.bf16.mxu0 0
    %287 = vmatpush1.bf16.msra.mxu0 0
    %288 = vmatprep.subr.bf16.mxu0 0
    %289 = vmatpush1.bf16.msra.mxu0 0
    %290 = vmatprep.subr.bf16.mxu0 0
    %291 = vmatpush1.bf16.msra.mxu0 0
    %292 = vmatprep.subr.bf16.mxu0 0
    %293 = vmatpush1.bf16.msra.mxu0 0
    %294 = vmatprep.subr.bf16.mxu0 0
    %295 = vmatpush1.bf16.msra.mxu0 0
    %296 = vmatprep.subr.bf16.mxu0 0
    %297 = vmatpush1.bf16.msra.mxu0 0
    %298 = vmatprep.subr.bf16.mxu0 0
    %299 = vmatpush1.bf16.msra.mxu0 0
    %300 = vmatprep.subr.bf16.mxu0 0
    %301 = vmatpush1.bf16.msra.mxu0 0
    %302 = vmatprep.mubr.bf16.mxu0 0
    %303 = vmatmul.mubr.bf16.gmra.mrb[0].mxu0 %v68
    %v304 = vpop.f32.mrb[0].mxu0
    %v305 = vadd.f32 %v49, %v304
    %v306 = vpop.f32.mrb[0].mxu0
    %v307 = vadd.f32 %v49, %v306
    %v308 = vpop.f32.mrb[0].mxu0
    %v309 = vadd.f32 %v54, %v308
    %v310 = vpop.f32.mrb[0].mxu0
    %v311 = vadd.f32 %v54, %v310
    %312 = vmatprep.mubr.bf16.mxu0 0
    %313 = vmatmul.mubr.bf16.gmra.mrb[0].mxu0 %v71
    %v314 = vpop.f32.mrb[0].mxu0
    %v315 = vadd.f32 %v59, %v314
    %v316 = vpop.f32.mrb[0].mxu0
    %v317 = vadd.f32 %v59, %v316
    %v318 = vpop.f32.mrb[0].mxu0
    %v319 = vadd.f32 %v64, %v318
    %v320 = vpop.f32.mrb[0].mxu0
    %v321 = vadd.f32 %v64, %v320
    %322 = vdwg.mxu0
    %v323 = vmax.f32 %v305, 0.0
    %v324 = vmax.f32 %v307, 0.0
    %v325 = vmax.f32 %v309, 0.0
    %v326 = vmax.f32 %v311, 0.0
    %v327 = vmax.f32 %v315, 0.0
    %v328 = vmax.f32 %v317, 0.0
    %v329 = vmax.f32 %v319, 0.0
    %v330 = vmax.f32 %v321, 0.0
    %331 = vmatprep.subr.mxu0 0.0
    %332 = vmatpush1.msra.mxu0 0.00390625
    %333 = vmatprep.subr.mxu0 0.0
    %334 = vmatpush1.msra.mxu0 0.00390625
    %335 = vmatprep.subr.mxu0 0.0
    %336 = vmatpush1.msra.mxu0 0.00390625
    %337 = vmatprep.subr.mxu0 0.0
    %338 = vmatpush1.msra.mxu0 0.00390625
    %339 = vmatprep.subr.mxu0 0.0
    %340 = vmatpush1.msra.mxu0 0.00390625
    %341 = vmatprep.subr.mxu0 0.0
    %342 = vmatpush1.msra.mxu0 0.00390625
    %343 = vmatprep.subr.mxu0 0.0
    %344 = vmatpush1.msra.mxu0 0.00390625
    %345 = vmatprep.subr.mxu0 0.0
    %346 = vmatpush1.msra.mxu0 0.00390625
    %347 = vmatprep.subr.mxu0 0.0
    %348 = vmatpush1.msra.mxu0 0.00390625
    %349 = vmatprep.subr.mxu0 0.0
    %350 = vmatpush1.msra.mxu0 0.00390625
    %351 = vmatprep.subr.mxu0 0.0
    %352 = vmatpush1.msra.mxu0 0.00390625
    %353 = vmatprep.subr.mxu0 0.0
    %354 = vmatpush1.msra.mxu0 0.00390625
    %355 = vmatprep.subr.mxu0 0.0
    %356 = vmatpush1.msra.mxu0 0.00390625
    %357 = vmatprep.subr.mxu0 0.0
    %358 = vmatpush1.msra.mxu0 0.00390625
    %359 = vmatprep.subr.mxu0 0.0
    %360 = vmatpush1.msra.mxu0 0.00390625
    %361 = vmatprep.subr.mxu0 0.0
    %362 = vmatpush1.msra.mxu0 0.00390625
    %363 = vmatprep.subr.mxu0 0.0
    %364 = vmatpush1.msra.mxu0 0.00390625
    %365 = vmatprep.subr.mxu0 0.0
    %366 = vmatpush1.msra.mxu0 0.00390625
    %367 = vmatprep.subr.mxu0 0.0
    %368 = vmatpush1.msra.mxu0 0.00390625
    %369 = vmatprep.subr.mxu0 0.0
    %370 = vmatpush1.msra.mxu0 0.00390625
    %371 = vmatprep.subr.mxu0 0.0
    %372 = vmatpush1.msra.mxu0 0.00390625
    %373 = vmatprep.subr.mxu0 0.0
    %374 = vmatpush1.msra.mxu0 0.00390625
    %375 = vmatprep.subr.mxu0 0.0
    %376 = vmatpush1.msra.mxu0 0.00390625
    %377 = vmatprep.subr.mxu0 0.0
    %378 = vmatpush1.msra.mxu0 0.00390625
    %379 = vmatprep.subr.mxu0 0.0
    %380 = vmatpush1.msra.mxu0 0.00390625
    %381 = vmatprep.subr.mxu0 0.0
    %382 = vmatpush1.msra.mxu0 0.00390625
    %383 = vmatprep.subr.mxu0 0.0
    %384 = vmatpush1.msra.mxu0 0.00390625
    %385 = vmatprep.subr.mxu0 0.0
    %386 = vmatpush1.msra.mxu0 0.00390625
    %387 = vmatprep.subr.mxu0 0.0
    %388 = vmatpush1.msra.mxu0 0.00390625
    %389 = vmatprep.subr.mxu0 0.0
    %390 = vmatpush1.msra.mxu0 0.00390625
    %391 = vmatprep.subr.mxu0 0.0
    %392 = vmatpush1.msra.mxu0 0.00390625
    %393 = vmatprep.subr.mxu0 0.0
    %394 = vmatpush1.msra.mxu0 0.00390625
    %395 = vmatprep.mubr.f32.mxu0 %v324
    %396 = vmatmul.mubr.f32.gmra.mrb[0].mxu0 %v323
    %v397 = vpop.f32.mrb[0].mxu0
    %v398 = vadd.f32 0.0, %v397
    %v399 = vpop.f32.mrb[0].mxu0
    %400 = vmatprep.mubr.f32.mxu0 %v326
    %401 = vmatmul.mubr.f32.gmra.mrb[0].mxu0 %v325
    %v402 = vpop.f32.mrb[0].mxu0
    %v403 = vadd.f32 0.0, %v402
    %v404 = vpop.f32.mrb[0].mxu0
    %405 = vmatprep.mubr.f32.mxu0 %v328
    %406 = vmatmul.mubr.f32.gmra.mrb[0].mxu0 %v327
    %v407 = vpop.f32.mrb[0].mxu0
    %v408 = vadd.f32 0.0, %v407
    %v409 = vpop.f32.mrb[0].mxu0
    %410 = vmatprep.mubr.f32.mxu0 %v330
    %411 = vmatmul.mubr.f32.gmra.mrb[0].mxu0 %v329
    %v412 = vpop.f32.mrb[0].mxu0
    %v413 = vadd.f32 0.0, %v412
    %v414 = vpop.f32.mrb[0].mxu0
    %415 = vdwg.mxu0
    %vm416 = vcmp.eq.s32.totalorder %v39, 1
    %v417 = vsel %vm416, 1, 0
    %v418 = vcvt.s32.f32 %v417
    %420 = vset.pattern.permute.xlu0 0
    %421 = vperm.xlu0 %420, %v398
    %v422 = vpop.permute.xlu0 %421
    %425 = vset.pattern.permute.xlu0 0
    %426 = vperm.xlu0 %425, %v403
    %v427 = vpop.permute.xlu0 %426
    %430 = vset.pattern.permute.xlu0 0
    %431 = vperm.xlu0 %430, %v408
    %v432 = vpop.permute.xlu0 %431
    %435 = vset.pattern.permute.xlu0 0
    %436 = vperm.xlu0 %435, %v413
    %v437 = vpop.permute.xlu0 %436
    %v439 = vmul.f32 %v422, %v418
    %v440 = vmul.f32 %v427, %v418
    %v441 = vmul.f32 %v432, %v418
    %v442 = vmul.f32 %v437, %v418
    %v443 = vadd.f32 %v253, %v439
    %v444 = vadd.f32 %v254, %v440
    %v445 = vadd.f32 %v255, %v441
    %v446 = vadd.f32 %v256, %v442
    %447 = vxpose.xlu0.b32.start [1/16] %v443, 128
    %448 = vxpose.xlu0.b32.cont [2/16] %v444, 128
    %449 = vxpose.xlu0.b32.cont [3/16] %v445, 128
    %450 = vxpose.xlu0.b32.cont [4/16] %v446, 128
    %451 = vxpose.xlu0.b32.cont [5/16] 0.0, 128
    %452 = vxpose.xlu0.b32.cont [6/16] 0.0, 128
    %453 = vxpose.xlu0.b32.cont [7/16] 0.0, 128
    %454 = vxpose.xlu0.b32.cont [8/16] 0.0, 128
    %455 = vxpose.xlu0.b32.cont [9/16] 0.0, 128
    %456 = vxpose.xlu0.b32.cont [10/16] 0.0, 128
    %457 = vxpose.xlu0.b32.cont [11/16] 0.0, 128
    %458 = vxpose.xlu0.b32.cont [12/16] 0.0, 128
    %459 = vxpose.xlu0.b32.cont [13/16] 0.0, 128
    %460 = vxpose.xlu0.b32.cont [14/16] 0.0, 128
    %461 = vxpose.xlu0.b32.cont [15/16] 0.0, 128
    %462 = vxpose.xlu0.b32.end [16/16] 0.0, 128
    %v463 = vpop.trf.xlu0
    %v464 = vpop.trf.xlu0
    %v465 = vpop.trf.xlu0
    %v466 = vpop.trf.xlu0
    %v467 = vpop.trf.xlu0
    %v468 = vpop.trf.xlu0
    %v469 = vpop.trf.xlu0
    %v470 = vpop.trf.xlu0
    %v471 = vpop.trf.xlu0
    %v472 = vpop.trf.xlu0
    %v473 = vpop.trf.xlu0
    %v474 = vpop.trf.xlu0
    %v475 = vpop.trf.xlu0
    %v476 = vpop.trf.xlu0
    %v477 = vpop.trf.xlu0
    %v478 = vpop.trf.xlu0
    %v479 = vld [vmem:[%s4] sm:$0xff]
    %v480 = vld [vmem:[%s4 + $0x8] sm:$0xff]
    %v481 = vld [vmem:[%s4 + $0x10] sm:$0xff]
    %v482 = vld [vmem:[%s4 + $0x18] sm:$0xff]
    %v483 = vld [vmem:[%s1] sm:$0x3]
    %v484 = vld [vmem:[%s5] sm:$0x3]
    %vm485 = vcmask 15360
    %v487 = vsel %vm485, %v483, 0
    %v490 = vsel %vm73, %v484, 0
    %492 = vmatprep.subr.mxu0 0.0
    %493 = vmatpush1.msra.mxu0 %v490
    %494 = vmatprep.subr.mxu0 0.0
    %495 = vmatpush1.msra.mxu0 0.0
    %496 = vmatprep.subr.mxu0 0.0
    %497 = vmatpush1.msra.mxu0 0.0
    %498 = vmatprep.subr.mxu0 0.0
    %499 = vmatpush1.msra.mxu0 0.0
    %500 = vmatprep.subr.mxu0 0.0
    %501 = vmatpush1.msra.mxu0 0.0
    %502 = vmatprep.subr.mxu0 0.0
    %503 = vmatpush1.msra.mxu0 0.0
    %504 = vmatprep.subr.mxu0 0.0
    %505 = vmatpush1.msra.mxu0 0.0
    %506 = vmatprep.subr.mxu0 0.0
    %507 = vmatpush1.msra.mxu0 0.0
    %508 = vmatprep.subr.mxu0 0.0
    %509 = vmatpush1.msra.mxu0 0.0
    %510 = vmatprep.subr.mxu0 0.0
    %511 = vmatpush1.msra.mxu0 0.0
    %512 = vmatprep.subr.mxu0 0.0
    %513 = vmatpush1.msra.mxu0 0.0
    %514 = vmatprep.subr.mxu0 0.0
    %515 = vmatpush1.msra.mxu0 0.0
    %516 = vmatprep.subr.mxu0 0.0
    %517 = vmatpush1.msra.mxu0 0.0
    %518 = vmatprep.subr.mxu0 0.0
    %519 = vmatpush1.msra.mxu0 0.0
    %520 = vmatprep.subr.mxu0 0.0
    %521 = vmatpush1.msra.mxu0 0.0
    %522 = vmatprep.subr.mxu0 0.0
    %523 = vmatpush1.msra.mxu0 0.0
    %524 = vmatprep.subr.mxu0 0.0
    %525 = vmatpush1.msra.mxu0 0.0
    %526 = vmatprep.subr.mxu0 0.0
    %527 = vmatpush1.msra.mxu0 0.0
    %528 = vmatprep.subr.mxu0 0.0
    %529 = vmatpush1.msra.mxu0 0.0
    %530 = vmatprep.subr.mxu0 0.0
    %531 = vmatpush1.msra.mxu0 0.0
    %532 = vmatprep.subr.mxu0 0.0
    %533 = vmatpush1.msra.mxu0 0.0
    %534 = vmatprep.subr.mxu0 0.0
    %535 = vmatpush1.msra.mxu0 0.0
    %536 = vmatprep.subr.mxu0 0.0
    %537 = vmatpush1.msra.mxu0 0.0
    %538 = vmatprep.subr.mxu0 0.0
    %539 = vmatpush1.msra.mxu0 0.0
    %540 = vmatprep.subr.mxu0 0.0
    %541 = vmatpush1.msra.mxu0 0.0
    %542 = vmatprep.subr.mxu0 0.0
    %543 = vmatpush1.msra.mxu0 0.0
    %544 = vmatprep.subr.mxu0 0.0
    %545 = vmatpush1.msra.mxu0 0.0
    %546 = vmatprep.subr.mxu0 0.0
    %547 = vmatpush1.msra.mxu0 0.0
    %548 = vmatprep.subr.mxu0 0.0
    %549 = vmatpush1.msra.mxu0 0.0
    %550 = vmatprep.subr.mxu0 0.0
    %551 = vmatpush1.msra.mxu0 0.0
    %552 = vmatprep.subr.mxu0 0.0
    %553 = vmatpush1.msra.mxu0 0.0
    %554 = vmatprep.subr.mxu0 0.0
    %555 = vmatpush1.msra.mxu0 0.0
    %556 = vmatprep.mubr.f32.mxu0 0.0
    %557 = vmatmul.mubr.f32.gmra.mrb[0].mxu0 %v487
    %v558 = vpop.f32.mrb[0].mxu0
    %v559 = vadd.f32 0.0, %v558
    %v560 = vpop.f32.mrb[0].mxu0
    %561 = vdwg.mxu0
    %vm562 = vcmask 261120
    %v564 = vsel %vm562, %v463, 0
    %566 = vmatprep.subr.mxu0 0.0
    %567 = vmatpush1.msra.mxu0 %v479
    %568 = vmatprep.subr.mxu0 0.0
    %569 = vmatpush1.msra.mxu0 %v480
    %570 = vmatprep.subr.mxu0 0.0
    %571 = vmatpush1.msra.mxu0 %v481
    %572 = vmatprep.subr.mxu0 0.0
    %573 = vmatpush1.msra.mxu0 %v482
    %574 = vmatprep.subr.mxu0 0.0
    %575 = vmatpush1.msra.mxu0 0.0
    %576 = vmatprep.subr.mxu0 0.0
    %577 = vmatpush1.msra.mxu0 0.0
    %578 = vmatprep.subr.mxu0 0.0
    %579 = vmatpush1.msra.mxu0 0.0
    %580 = vmatprep.subr.mxu0 0.0
    %581 = vmatpush1.msra.mxu0 0.0
    %582 = vmatprep.subr.mxu0 0.0
    %583 = vmatpush1.msra.mxu0 0.0
    %584 = vmatprep.subr.mxu0 0.0
    %585 = vmatpush1.msra.mxu0 0.0
    %586 = vmatprep.subr.mxu0 0.0
    %587 = vmatpush1.msra.mxu0 0.0
    %588 = vmatprep.subr.mxu0 0.0
    %589 = vmatpush1.msra.mxu0 0.0
    %590 = vmatprep.subr.mxu0 0.0
    %591 = vmatpush1.msra.mxu0 0.0
    %592 = vmatprep.subr.mxu0 0.0
    %593 = vmatpush1.msra.mxu0 0.0
    %594 = vmatprep.subr.mxu0 0.0
    %595 = vmatpush1.msra.mxu0 0.0
    %596 = vmatprep.subr.mxu0 0.0
    %597 = vmatpush1.msra.mxu0 0.0
    %598 = vmatprep.subr.mxu0 0.0
    %599 = vmatpush1.msra.mxu0 0.0
    %600 = vmatprep.subr.mxu0 0.0
    %601 = vmatpush1.msra.mxu0 0.0
    %602 = vmatprep.subr.mxu0 0.0
    %603 = vmatpush1.msra.mxu0 0.0
    %604 = vmatprep.subr.mxu0 0.0
    %605 = vmatpush1.msra.mxu0 0.0
    %606 = vmatprep.subr.mxu0 0.0
    %607 = vmatpush1.msra.mxu0 0.0
    %608 = vmatprep.subr.mxu0 0.0
    %609 = vmatpush1.msra.mxu0 0.0
    %610 = vmatprep.subr.mxu0 0.0
    %611 = vmatpush1.msra.mxu0 0.0
    %612 = vmatprep.subr.mxu0 0.0
    %613 = vmatpush1.msra.mxu0 0.0
    %614 = vmatprep.subr.mxu0 0.0
    %615 = vmatpush1.msra.mxu0 0.0
    %616 = vmatprep.subr.mxu0 0.0
    %617 = vmatpush1.msra.mxu0 0.0
    %618 = vmatprep.subr.mxu0 0.0
    %619 = vmatpush1.msra.mxu0 0.0
    %620 = vmatprep.subr.mxu0 0.0
    %621 = vmatpush1.msra.mxu0 0.0
    %622 = vmatprep.subr.mxu0 0.0
    %623 = vmatpush1.msra.mxu0 0.0
    %624 = vmatprep.subr.mxu0 0.0
    %625 = vmatpush1.msra.mxu0 0.0
    %626 = vmatprep.subr.mxu0 0.0
    %627 = vmatpush1.msra.mxu0 0.0
    %628 = vmatprep.subr.mxu0 0.0
    %629 = vmatpush1.msra.mxu0 0.0
    %630 = vmatprep.mubr.f32.mxu0 0.0
    %631 = vmatmul.mubr.f32.gmra.mrb[0].mxu0 %v564
    %v632 = vpop.f32.mrb[0].mxu0
    %v633 = vadd.f32 %v559, %v632
    %v634 = vpop.f32.mrb[0].mxu0
    %635 = vdwg.mxu0
    %v636 = vld [vmem:[%s6] sm:$0x1]
    %v638 = vlaneseq
    %v639 = vshrl.u32 %v638, 7
    %v640 = vsub.s32 0, %v639
    %v641 = vrot.slane %v636, %v640
    %v643 = vadd.f32 %v633, %v641
    %vm644 = vcmask 33792
    %645 = vst.msk [vmem:[#allocation2] sm:$0x3] %vm644, %v643
    // Predicated region
    $region30: #{tpu_custom_call.1} parent=1 // pred_check
      _
    $region31: #{tpu_custom_call.1} parent=1 // pred_check_branch
      %647 = sbr.rel (0) target = $region33
    $region32: #{tpu_custom_call.1} parent=1 // pred_region
      %s649 = ssub.s32 32, 32
      %650 = vsyncadd [#allocation3], %s649
      %s652 = sshll.u32 [#allocation2], 4
      %s653 = int_to_ptr.vmem [resolvable:$true] %s652
      %655 = dma.vmem_to_hbm [thread:$0]  %s653, 32, %s7, [#allocation3]
    $region33: #{tpu_custom_call.1} parent=1 // pred_fallthru
      _
    // Predicated region
    $region34: #{tpu_custom_call.1} parent=1 // pred_check
      _
    $region35: #{tpu_custom_call.1} parent=1 // pred_check_branch
      %657 = sbr.rel (0) target = $region37
    $region36: #{tpu_custom_call.1} parent=1 // pred_region
      %658 = dma.done [#allocation3], 32
    $region37: #{tpu_custom_call.1} parent=1 // pred_fallthru
      _
    %659 = vsyncpa [#allocation3], 1

</llo_original>
